<compile_context>
chip_gen: v7x
topology: tpu7x:2x2x1
jax: 0.10.0
libtpu: 0.0.40
codegen_flags: <defaults>
</compile_context>

<pallas_src>
import functools

import jax
import jax.numpy as jnp
from jax.experimental import pallas as pl
from jax.experimental.pallas import tpu as pltpu

PAD = 128  # lane-padded hidden width (all hidden dims <= 128)
MAX_TILE_B = 8192  # safe on v7x's 32 MiB scoped / 64 MiB physical VMEM


def _use_bf16_tanh():
    """bf16 EUP tanh exists on v6e/v7x; v5e and earlier must stay f32."""
    try:
        kind = jax.devices()[0].device_kind.lower()
    except Exception:
        return False
    for tag in ("v2", "v3", "v4", "v5"):
        if tag in kind:
            return False
    return True


def _descriminator2_kernel(x_ref, w_ref, m_ref, out_ref, *, bf16_tanh):
    """x_ref: (TB, PAD) bf16 (lanes >= in_dim are zero),
    w_ref: (4, PAD, PAD) bf16 (zero-padded W1..W4),
    m_ref: (8, PAD) f32 (rows 0-3: b1..b4, row 4 lane 0: b5, row 5: w5^T),
    out_ref: (TB, 1) f32."""
    f32 = jnp.float32
    bf16 = jnp.bfloat16

    h = x_ref[...]  # (TB, PAD) bf16

    # Layers 1-4: uniform (TB,128)x(128,128) MXU passes, f32 accumulate + bias.
    for l in range(4):
        z = jnp.dot(h, w_ref[l], preferred_element_type=f32) + m_ref[l:l + 1, :]
        if bf16_tanh:
            # v6e/v7x: bf16 EUP tanh (~2x EUP throughput); output already bf16
            # for the next MXU pass.
            h = jnp.tanh(z.astype(bf16))
        else:
            # v5e: f32 tanh on the EUP, one cast for the next MXU pass.
            h = jnp.tanh(z).astype(bf16)

    # Layer 5 (out_features = 1): VPU multiply + XLU lane-reduce, no MXU pass.
    w5_row = m_ref[5:6, :]                                    # (1, PAD) f32
    logits = jnp.sum(h.astype(f32) * w5_row, axis=-1, keepdims=True) + m_ref[4:5, 0:1]
    out_ref[...] = jax.nn.sigmoid(logits).astype(out_ref.dtype)


def pack_params(params):
    """Pack PyTorch-style per-layer params into the two kernel operands.

    params: dict with w1..w5 of shape (in, out) f32 and b1..b5 of shape (1, out).
    Returns:
      w_slab: (4, PAD, PAD) bf16 — zero-padded W1..W4
      misc:   (8, PAD)   f32  — rows 0-3 = b1..b4, row 4 lane 0 = b5, row 5 = w5^T
    """
    def pad_w(w):
        i, o = w.shape
        return jnp.pad(w, ((0, PAD - i), (0, PAD - o)))

    w_slab = jnp.stack([pad_w(params[f"w{l}"]) for l in range(1, 5)]).astype(jnp.bfloat16)

    def pad_row(v):
        v = jnp.reshape(v, (-1,)).astype(jnp.float32)
        return jnp.pad(v, (0, PAD - v.shape[0]))

    rows = [pad_row(params[f"b{l}"]) for l in range(1, 5)]   # rows 0-3: b1..b4
    rows.append(pad_row(params["b5"]))                       # row 4: b5 (lane 0)
    rows.append(pad_row(params["w5"][:, 0]))                 # row 5: w5^T
    rows.append(jnp.zeros((PAD,), jnp.float32))              # row 6: pad
    rows.append(jnp.zeros((PAD,), jnp.float32))              # row 7: pad (sublane mult. of 8)
    misc = jnp.stack(rows)
    return w_slab, misc


def _choose_tile(B, tile_b):
    """Pick a batch tile: multiple of 8 (or == B), capped, and — when there is
    more than one grid step — prefer an even step count so v7x's two
    TensorCores each get a balanced, pipelined share (no-op on v5e/v6e)."""
    tb = min(tile_b, MAX_TILE_B, B)
    if tb != B:
        tb = max(8, (tb // 8) * 8)
    steps = pl.cdiv(B, tb)
    if steps > 1 and steps % 2 == 1:
        steps += 1
        tb = max(8, ((pl.cdiv(B, steps) + 7) // 8) * 8)
    return tb


def descriminator2_forward(x, w_slab, misc, *, tile_b=MAX_TILE_B, bf16_tanh=None):
    """x: (B, des_fc1_in) float.  Collapse (T, B) -> (T*B,) at the call site so
    one pallas_call amortizes launch/DMA cost over all rows."""
    if bf16_tanh is None:
        bf16_tanh = _use_bf16_tanh()

    B, in_dim = x.shape
    # Lane-pad x to the full 128-wide padded input (zeros are exact through the
    # zero-padded weights) and feed the MXU in bf16.
    x = jnp.pad(x.astype(jnp.bfloat16), ((0, 0), (0, PAD - in_dim)))

    tb = _choose_tile(B, tile_b)
    grid = (pl.cdiv(B, tb),)

    kernel = functools.partial(_descriminator2_kernel, bf16_tanh=bf16_tanh)

    return pl.pallas_call(
        kernel,
        out_shape=jax.ShapeDtypeStruct((B, 1), jnp.float32),
        grid=grid,
        in_specs=[
            pl.BlockSpec((tb, PAD), lambda i: (i, 0)),
            # Constant index maps -> weight/bias slabs stay VMEM-resident
            # across all grid steps (no re-DMA).
            pl.BlockSpec(w_slab.shape, lambda i: (0, 0, 0)),
            pl.BlockSpec(misc.shape, lambda i: (0, 0)),
        ],
        out_specs=pl.BlockSpec((tb, 1), lambda i: (i, 0)),
        compiler_params=pltpu.CompilerParams(
            dimension_semantics=("parallel",)),   # v7x: shard batch over 2 TCs
    )(x, w_slab, misc)


def init_params(key, config):
    """PyTorch nn.Linear default init: U(-1/sqrt(fan_in), 1/sqrt(fan_in))."""
    dims = [
        (config["des_fc1_in"], config["des_fc1_out"]),
        (config["des_fc2_in"], config["des_fc2_out"]),
        (config["des_fc3_in"], config["des_fc3_out"]),
        (config["des_fc4_in"], config["des_fc4_out"]),
        (config["des_fc5_in"], config["des_fc5_out"]),
    ]
    params = {}
    keys = jax.random.split(key, 2 * len(dims))
    for i, (fan_in, fan_out) in enumerate(dims):
        bound = 1.0 / jnp.sqrt(jnp.float32(fan_in))
        params[f"w{i + 1}"] = jax.random.uniform(
            keys[2 * i], (fan_in, fan_out), minval=-bound, maxval=bound,
            dtype=jnp.float32)
        params[f"b{i + 1}"] = jax.random.uniform(
            keys[2 * i + 1], (1, fan_out), minval=-bound, maxval=bound,
            dtype=jnp.float32)
    return params


def reference_forward(x, params, *, bf16_tanh):
    """Pure-JAX reference mirroring the kernel numerics (bf16 MXU inputs,
    f32 accumulation and bias, generation-gated tanh precision)."""
    f32, bf16 = jnp.float32, jnp.bfloat16
    h = x.astype(bf16)
    for i in range(1, 5):
        w = params[f"w{i}"].astype(bf16)
        z = h.astype(f32) @ w.astype(f32) + params[f"b{i}"].astype(f32)
        if bf16_tanh:
            h = jnp.tanh(z.astype(bf16))
        else:
            h = jnp.tanh(z).astype(bf16)
    logits = h.astype(f32) @ params["w5"].astype(f32) + params["b5"].astype(f32)
    return jax.nn.sigmoid(logits)


if __name__ == "__main__":
    # Small config consistent with a SMPL-pose discriminator MLP.
    config = {
        "des_fc1_in": 72, "des_fc1_out": 64,
        "des_fc2_in": 64, "des_fc2_out": 64,
        "des_fc3_in": 64, "des_fc3_out": 32,
        "des_fc4_in": 32, "des_fc4_out": 32,
        "des_fc5_in": 32, "des_fc5_out": 1,
    }
    T, B = 16, 8   # LSTM timesteps x batch — collapsed into one pallas_call

    key = jax.random.PRNGKey(0)
    k_params, k_x = jax.random.split(key)
    params = init_params(k_params, config)
    w_slab, misc = pack_params(params)

    x_seq = jax.random.normal(k_x, (T, B, config["des_fc1_in"]), dtype=jnp.float32)
    x = x_seq.reshape(T * B, config["des_fc1_in"])   # batch the call site

    bf16_tanh = _use_bf16_tanh()

    # tile_b=32 -> 4 grid steps (even): exercises the batch grid + resident
    # weights, and gives v7x 2 balanced steps per TensorCore.
    out = descriminator2_forward(x, w_slab, misc, tile_b=32, bf16_tanh=bf16_tanh)
    out = jax.block_until_ready(out)
    out_seq = out.reshape(T, B, 1)   # per-timestep view for the caller

    ref = reference_forward(x, params, bf16_tanh=bf16_tanh)
    assert out.shape == (T * B, config["des_fc5_out"])
    assert out_seq.shape == (T, B, 1)
    assert bool(jnp.all(jnp.isfinite(out)))
    # bf16-tanh path: allow for EUP-vs-XLA bf16 tanh rounding differences.
    atol = 2e-2 if bf16_tanh else 1e-4
    assert jnp.allclose(out, ref, atol=atol, rtol=atol)
    print("KERNEL_OK")
</pallas_src>

<mosaic_0001>
module attributes {stable_mosaic.version = 11 : i64} {
  func.func @_descriminator2_kernel(%arg0: i32, %arg1: memref<32x128xbf16, #tpu.memory_space<vmem>>, %arg2: memref<4x128x128xbf16, #tpu.memory_space<vmem>>, %arg3: memref<8x128xf32, #tpu.memory_space<vmem>>, %arg4: memref<32x1xf32, #tpu.memory_space<vmem>>) attributes {dimension_semantics = [#tpu.dimension_semantics<parallel>], iteration_bounds = array<i64: 4>, scalar_prefetch = 0 : i64, scratch_operands = 0 : i64, tpu.core_type = #tpu.core_type<tc>, window_params = [{transform_indices = @transform_0, window_bounds = array<i64: 32, 128>}, {pipeline_mode = #tpu.pipeline_mode<synchronous>, transform_indices = @transform_1, window_bounds = array<i64: 4, 128, 128>}, {pipeline_mode = #tpu.pipeline_mode<synchronous>, transform_indices = @transform_2, window_bounds = array<i64: 8, 128>}, {transform_indices = @transform_3, window_bounds = array<i64: 32, 1>}]} {
    %c0 = arith.constant 0 : index
    %c0_0 = arith.constant 0 : index
    %0 = vector.load %arg1[%c0, %c0_0] : memref<32x128xbf16, #tpu.memory_space<vmem>>, vector<32x128xbf16>
    %c0_1 = arith.constant 0 : index
    %c0_2 = arith.constant 0 : index
    %c0_3 = arith.constant 0 : index
    %1 = vector.load %arg2[%c0_1, %c0_2, %c0_3] : memref<4x128x128xbf16, #tpu.memory_space<vmem>>, vector<1x128x128xbf16>
    %2 = vector.shape_cast %1 : vector<1x128x128xbf16> to vector<128x128xbf16>
    %cst = arith.constant dense<0.000000e+00> : vector<32x128xf32>
    %3 = tpu.matmul %0, %2, %cst {dimension_numbers = #tpu.dot_dimension_numbers<[1], [0], [0], [1], [0, 0, 1, 1], [], []>} : vector<32x128xbf16>, vector<128x128xbf16>, vector<32x128xf32> -> vector<32x128xf32>
    %c0_4 = arith.constant 0 : index
    %c0_5 = arith.constant 0 : index
    %4 = vector.load %arg3[%c0_4, %c0_5] : memref<8x128xf32, #tpu.memory_space<vmem>>, vector<1x128xf32>
    %5 = vector.broadcast %4 : vector<1x128xf32> to vector<32x128xf32>
    %6 = arith.addf %3, %5 : vector<32x128xf32>
    %7 = arith.truncf %6 : vector<32x128xf32> to vector<32x128xbf16>
    %8 = math.tanh %7 : vector<32x128xbf16>
    %c1 = arith.constant 1 : index
    %c0_6 = arith.constant 0 : index
    %c0_7 = arith.constant 0 : index
    %9 = vector.load %arg2[%c1, %c0_6, %c0_7] : memref<4x128x128xbf16, #tpu.memory_space<vmem>>, vector<1x128x128xbf16>
    %10 = vector.shape_cast %9 : vector<1x128x128xbf16> to vector<128x128xbf16>
    %cst_8 = arith.constant dense<0.000000e+00> : vector<32x128xf32>
    %11 = tpu.matmul %8, %10, %cst_8 {dimension_numbers = #tpu.dot_dimension_numbers<[1], [0], [0], [1], [0, 0, 1, 1], [], []>} : vector<32x128xbf16>, vector<128x128xbf16>, vector<32x128xf32> -> vector<32x128xf32>
    %c1_9 = arith.constant 1 : index
    %c0_10 = arith.constant 0 : index
    %12 = vector.load %arg3[%c1_9, %c0_10] : memref<8x128xf32, #tpu.memory_space<vmem>>, vector<1x128xf32>
    %13 = vector.broadcast %12 : vector<1x128xf32> to vector<32x128xf32>
    %14 = arith.addf %11, %13 : vector<32x128xf32>
    %15 = arith.truncf %14 : vector<32x128xf32> to vector<32x128xbf16>
    %16 = math.tanh %15 : vector<32x128xbf16>
    %c2 = arith.constant 2 : index
    %c0_11 = arith.constant 0 : index
    %c0_12 = arith.constant 0 : index
    %17 = vector.load %arg2[%c2, %c0_11, %c0_12] : memref<4x128x128xbf16, #tpu.memory_space<vmem>>, vector<1x128x128xbf16>
    %18 = vector.shape_cast %17 : vector<1x128x128xbf16> to vector<128x128xbf16>
    %cst_13 = arith.constant dense<0.000000e+00> : vector<32x128xf32>
    %19 = tpu.matmul %16, %18, %cst_13 {dimension_numbers = #tpu.dot_dimension_numbers<[1], [0], [0], [1], [0, 0, 1, 1], [], []>} : vector<32x128xbf16>, vector<128x128xbf16>, vector<32x128xf32> -> vector<32x128xf32>
    %c2_14 = arith.constant 2 : index
    %c0_15 = arith.constant 0 : index
    %20 = vector.load %arg3[%c2_14, %c0_15] : memref<8x128xf32, #tpu.memory_space<vmem>>, vector<1x128xf32>
    %21 = vector.broadcast %20 : vector<1x128xf32> to vector<32x128xf32>
    %22 = arith.addf %19, %21 : vector<32x128xf32>
    %23 = arith.truncf %22 : vector<32x128xf32> to vector<32x128xbf16>
    %24 = math.tanh %23 : vector<32x128xbf16>
    %c3 = arith.constant 3 : index
    %c0_16 = arith.constant 0 : index
    %c0_17 = arith.constant 0 : index
    %25 = vector.load %arg2[%c3, %c0_16, %c0_17] : memref<4x128x128xbf16, #tpu.memory_space<vmem>>, vector<1x128x128xbf16>
    %26 = vector.shape_cast %25 : vector<1x128x128xbf16> to vector<128x128xbf16>
    %cst_18 = arith.constant dense<0.000000e+00> : vector<32x128xf32>
    %27 = tpu.matmul %24, %26, %cst_18 {dimension_numbers = #tpu.dot_dimension_numbers<[1], [0], [0], [1], [0, 0, 1, 1], [], []>} : vector<32x128xbf16>, vector<128x128xbf16>, vector<32x128xf32> -> vector<32x128xf32>
    %c3_19 = arith.constant 3 : index
    %c0_20 = arith.constant 0 : index
    %28 = vector.load %arg3[%c3_19, %c0_20] : memref<8x128xf32, #tpu.memory_space<vmem>>, vector<1x128xf32>
    %29 = vector.broadcast %28 : vector<1x128xf32> to vector<32x128xf32>
    %30 = arith.addf %27, %29 : vector<32x128xf32>
    %31 = arith.truncf %30 : vector<32x128xf32> to vector<32x128xbf16>
    %32 = math.tanh %31 : vector<32x128xbf16>
    %c5 = arith.constant 5 : index
    %c0_21 = arith.constant 0 : index
    %33 = vector.load %arg3[%c5, %c0_21] : memref<8x128xf32, #tpu.memory_space<vmem>>, vector<1x128xf32>
    %34 = arith.extf %32 : vector<32x128xbf16> to vector<32x128xf32>
    %35 = vector.broadcast %33 : vector<1x128xf32> to vector<32x128xf32>
    %36 = arith.mulf %34, %35 : vector<32x128xf32>
    %cst_22 = arith.constant dense<0.000000e+00> : vector<32xf32>
    %37 = vector.multi_reduction <add>, %36, %cst_22 [1] : vector<32x128xf32> to vector<32xf32>
    %38 = vector.shape_cast %37 : vector<32xf32> to vector<32x1xf32>
    %c4 = arith.constant 4 : index
    %c0_23 = arith.constant 0 : index
    %39 = vector.load %arg3[%c4, %c0_23] : memref<8x128xf32, #tpu.memory_space<vmem>>, vector<1x1xf32>
    %40 = vector.broadcast %39 : vector<1x1xf32> to vector<32x1xf32>
    %41 = arith.addf %38, %40 : vector<32x1xf32>
    %42 = arith.negf %41 : vector<32x1xf32>
    %43 = math.exp %42 : vector<32x1xf32>
    %cst_24 = arith.constant 1.000000e+00 : f32
    %44 = vector.broadcast %cst_24 : f32 to vector<32x1xf32>
    %45 = arith.addf %44, %43 : vector<32x1xf32>
    %46 = arith.divf %44, %45 : vector<32x1xf32>
    %c0_25 = arith.constant 0 : index
    %c0_26 = arith.constant 0 : index
    %47 = vector.load %arg4[%c0_25, %c0_26] : memref<32x1xf32, #tpu.memory_space<vmem>>, vector<32x1xf32>
    tpu.vector_store %arg4[%c0_25, %c0_26], %46 {strides = array<i32>} : memref<32x1xf32, #tpu.memory_space<vmem>>, vector<32x1xf32>,
    return
  }
  func.func @transform_0(%arg0: i32) -> (i32, i32) {
    %c0_i32 = arith.constant 0 : i32
    %c0_i32_0 = arith.constant 0 : i32
    return %arg0, %c0_i32 : i32, i32
  }
  func.func @transform_1(%arg0: i32) -> (i32, i32, i32) {
    %c0_i32 = arith.constant 0 : i32
    %c0_i32_0 = arith.constant 0 : i32
    %c0_i32_1 = arith.constant 0 : i32
    %c0_i32_2 = arith.constant 0 : i32
    return %c0_i32, %c0_i32_0, %c0_i32_1 : i32, i32, i32
  }
  func.func @transform_2(%arg0: i32) -> (i32, i32) {
    %c0_i32 = arith.constant 0 : i32
    %c0_i32_0 = arith.constant 0 : i32
    %c0_i32_1 = arith.constant 0 : i32
    return %c0_i32, %c0_i32_0 : i32, i32
  }
  func.func @transform_3(%arg0: i32) -> (i32, i32) {
    %c0_i32 = arith.constant 0 : i32
    %c0_i32_0 = arith.constant 0 : i32
    return %arg0, %c0_i32 : i32, i32
  }
}

</mosaic_0001>

<llo_original>
// kernel: tpu_custom_call.1
$region0: #{tpu_custom_call.1}
  #allocation0 [shape = 'u32[]', space=smem, size = 0x4, offset = 0x4, fixed_abs, tag = 'smem constant byte address 0x4 - core index']
  #allocation1 [shape = 'u32[144,128]{1,0:T(1,128)}', space=vmem, size = 0x12000, scoped, tag = 'internal scratch']
  %s0 = inlined_call_operand.hbm [shape: bf16[128,128], index: 0, kind: input, shape index: {}]
  %s1 = inlined_call_operand.hbm [shape: bf16[4,128,128], index: 1, kind: input, shape index: {}]
  %s2 = inlined_call_operand.hbm [shape: f32[8,128], index: 2, kind: input, shape index: {}]
  %s3 = inlined_call_operand.vmem [shape: f32[128,1], index: 3, kind: output, shape index: {}]
  %s4 = sld [smem:[#allocation0]]
  $region57: #{tpu_custom_call.1} parent=0
    _
  %s6 = ssub.s32 1, %s4
  %s7 = scalar_select 0, %s6, %s4
  $region1: #{tpu_custom_call.1} parent=0
    #allocation2 [shape = 'u8[16384]{0}', space=vmem, size = 0x4000, scoped, tag = 'input window, operand 0']
    #allocation3 [shape = 's32[2]{0}', space=sflag, size = 0x8, scoped, tag = 'scoped memory for tpu_custom_call.1']
    #allocation4 [shape = 'u8[131072]{0}', space=vmem, size = 0x20000, scoped, tag = 'input window, operand 1, single buffered']
    #allocation5 [shape = 's32[1]{0}', space=sflag, size = 0x4, scoped, tag = 'scoped memory for tpu_custom_call.1']
    #allocation6 [shape = 'u8[4096]{0}', space=vmem, size = 0x1000, scoped, tag = 'input window, operand 2, single buffered']
    %8 = vsyncpa [#allocation3], 0
    %s9 = scalar_lea.sflag [#allocation3], 1
    %10 = vsyncpa %s9, 0
    %11 = vsyncpa [#allocation5], 0
    loop: start=0, step=1, limit=6
    $region2: #{tpu_custom_call.1} parent=1 // loop_pre_header
      _
    $region3: #{tpu_custom_call.1} parent=1 // loop_header
      %s13 = sphi 0, %s17
      %p14 = scmp.ge.s32.totalorder %s13, 6
      %s23 = sphi 0, %s25
      %s26 = sphi 0, %s23
      %s27 = sphi 0, %s26
      %s43 = sphi 0, %s27
      %s47 = sphi 0, %s47
      %s49 = sphi 0, %s47
      %s50 = sphi 0, %s49
      %s64 = sphi 0, %s50
      %s68 = sphi 0, %s68
      %s70 = sphi 0, %s68
      %s71 = sphi 0, %s70
      %s85 = sphi 0, %s71
      %s91 = sphi 0, %s93
      %s94 = sphi 0, %s91
      %s95 = sphi 0, %s94
      %s111 = sphi 0, %s95
    $region4: #{tpu_custom_call.1} parent=1 // loop_header_branch
      %16 = sbr.rel (%p14) target = $region8
    $region5: #{tpu_custom_call.1} parent=1 // loop_body
      %s18 = ssub.s32 %s13, 1
      %s19 = ssub.s32 %s13, 2
      %s20 = sadd.s32 %s13, 1
      %s21 = ssub.s32 %s13, %s20
      %p22 = scmp.eq.s32.totalorder %s21, 0
      %s24 = sadd.s32 %s23, 1
      %s25 = scalar_select %p22, %s23, %s24
      %p28 = pneg %p22
      %p29 = scmp.eq.s32.totalorder %s13, 3
      %p30 = por %p28, %p29
      %p31 = scmp.ne.s32.totalorder %s23, %s26
      %p32 = scmp.eq.s32.totalorder %s13, 0
      %p33 = por %p31, %p32
      %p34 = scmp.ne.s32.totalorder %s23, %s26
      %p35 = scmp.eq.s32.totalorder %s18, 3
      %p36 = por %p34, %p35
      %p37 = scmp.ne.s32.totalorder %s26, %s27
      %p38 = scmp.eq.s32.totalorder %s18, 0
      %p39 = por %p37, %p38
      %p40 = scmp.ne.s32.totalorder %s26, %s27
      %p41 = scmp.eq.s32.totalorder %s19, 3
      %p42 = por %p40, %p41
      %p44 = scmp.ne.s32.totalorder %s27, %s43
      %p45 = scmp.eq.s32.totalorder %s19, 0
      %p46 = por %p44, %p45
      %s48 = sadd.s32 %s47, 1
      %p51 = scmp.eq.s32.totalorder %s13, 3
      %p52 = scmp.ne.s32.totalorder %s47, %s49
      %p53 = scmp.eq.s32.totalorder %s13, 0
      %p54 = por %p52, %p53
      %p55 = scmp.ne.s32.totalorder %s47, %s49
      %p56 = scmp.eq.s32.totalorder %s18, 3
      %p57 = por %p55, %p56
      %p58 = scmp.ne.s32.totalorder %s49, %s50
      %p59 = scmp.eq.s32.totalorder %s18, 0
      %p60 = por %p58, %p59
      %p61 = scmp.ne.s32.totalorder %s49, %s50
      %p62 = scmp.eq.s32.totalorder %s19, 3
      %p63 = por %p61, %p62
      %p65 = scmp.ne.s32.totalorder %s50, %s64
      %p66 = scmp.eq.s32.totalorder %s19, 0
      %p67 = por %p65, %p66
      %s69 = sadd.s32 %s68, 1
      %p72 = scmp.eq.s32.totalorder %s13, 3
      %p73 = scmp.ne.s32.totalorder %s68, %s70
      %p74 = scmp.eq.s32.totalorder %s13, 0
      %p75 = por %p73, %p74
      %p76 = scmp.ne.s32.totalorder %s68, %s70
      %p77 = scmp.eq.s32.totalorder %s18, 3
      %p78 = por %p76, %p77
      %p79 = scmp.ne.s32.totalorder %s70, %s71
      %p80 = scmp.eq.s32.totalorder %s18, 0
      %p81 = por %p79, %p80
      %p82 = scmp.ne.s32.totalorder %s70, %s71
      %p83 = scmp.eq.s32.totalorder %s19, 3
      %p84 = por %p82, %p83
      %p86 = scmp.ne.s32.totalorder %s71, %s85
      %p87 = scmp.eq.s32.totalorder %s19, 0
      %p88 = por %p86, %p87
      %s89 = ssub.s32 %s13, %s20
      %p90 = scmp.eq.s32.totalorder %s89, 0
      %s92 = sadd.s32 %s91, 1
      %s93 = scalar_select %p90, %s91, %s92
      %p96 = pneg %p90
      %p97 = scmp.eq.s32.totalorder %s13, 3
      %p98 = por %p96, %p97
      %p99 = scmp.ne.s32.totalorder %s91, %s94
      %p100 = scmp.eq.s32.totalorder %s13, 0
      %p101 = por %p99, %p100
      %p102 = scmp.ne.s32.totalorder %s91, %s94
      %p103 = scmp.eq.s32.totalorder %s18, 3
      %p104 = por %p102, %p103
      %p105 = scmp.ne.s32.totalorder %s94, %s95
      %p106 = scmp.eq.s32.totalorder %s18, 0
      %p107 = por %p105, %p106
      %p108 = scmp.ne.s32.totalorder %s94, %s95
      %p109 = scmp.eq.s32.totalorder %s19, 3
      %p110 = por %p108, %p109
      %p112 = scmp.ne.s32.totalorder %s95, %s111
      %p113 = scmp.eq.s32.totalorder %s19, 0
      %p114 = por %p112, %p113
      %p115 = scmp.le.s32.totalorder 1, %s13
      %p116 = scmp.lt.s32.totalorder %s13, 5
      %p117 = pnand %p115, %p116
      %p118 = pneg %p117
      // Predicated region
      $region9: #{tpu_custom_call.1} parent=5 // pred_check
        _
      $region10: #{tpu_custom_call.1} parent=5 // pred_check_branch
        %120 = sbr.rel (%p117) target = $region12
      $region11: #{tpu_custom_call.1} parent=5 // pred_region
        %s121 = ssub.s32 %s13, 1
        // Predicated region
        $region13: #{tpu_custom_call.1} parent=11 // pred_check
          %p122 = pneg %p60
        $region14: #{tpu_custom_call.1} parent=11 // pred_check_branch
          %124 = sbr.rel (%p122) target = $region16
        $region15: #{tpu_custom_call.1} parent=11 // pred_region
          %s126 = ssub.s32 4096, 4096
          %127 = vsyncadd [#allocation5], %s126
          %s128 = sshll.u32 [#allocation4], 4
          %s129 = int_to_ptr.vmem [resolvable:$true] %s128
          %134 = dma.hbm_to_vmem [thread:$0]  %s1, 4096, %s129, [#allocation5], 64, 64, 4
        $region16: #{tpu_custom_call.1} parent=11 // pred_fallthru
          _
        // Predicated region
        $region17: #{tpu_custom_call.1} parent=11 // pred_check
          %p135 = pneg %p81
        $region18: #{tpu_custom_call.1} parent=11 // pred_check_branch
          %137 = sbr.rel (%p135) target = $region20
        $region19: #{tpu_custom_call.1} parent=11 // pred_region
          %s139 = ssub.s32 128, 128
          %140 = vsyncadd [#allocation5], %s139
          %s142 = sshll.u32 [#allocation6], 4
          %s143 = int_to_ptr.vmem [resolvable:$true] %s142
          %145 = dma.hbm_to_vmem [thread:$0]  %s2, 128, %s143, [#allocation5]
        $region20: #{tpu_custom_call.1} parent=11 // pred_fallthru
          _
      $region12: #{tpu_custom_call.1} parent=5 // pred_fallthru
        _
      %p146 = scmp.lt.s32.totalorder %s13, 4
      // Predicated region
      $region21: #{tpu_custom_call.1} parent=5 // pred_check
        %p147 = pneg %p146
      $region22: #{tpu_custom_call.1} parent=5 // pred_check_branch
        %149 = sbr.rel (%p147) target = $region24
      $region23: #{tpu_custom_call.1} parent=5 // pred_region
        // Predicated region
        $region25: #{tpu_custom_call.1} parent=23 // pred_check
          %p150 = pneg %p33
        $region26: #{tpu_custom_call.1} parent=23 // pred_check_branch
          %152 = sbr.rel (%p150) target = $region28
        $region27: #{tpu_custom_call.1} parent=23 // pred_region
          %s153 = sand.u32 %s23, 1
          %s154 = scalar_lea.sflag [#allocation3], %s153
          %s155 = sand.u32 %s23, 1
          %s156 = smul.addr %s155, 16
          %s157 = scalar_lea.vmem [#allocation2], %s156
          %s158 = smul.u32 4, %s13
          %s160 = ssub.s32 256, 256
          %161 = vsyncadd %s154, %s160
          %s162 = smul.addr %s158, 64
          %s163 = scalar_lea.hbm %s0, %s162
          %s164 = sshll.u32 %s157, 4
          %s165 = int_to_ptr.vmem [resolvable:$true] %s164
          %170 = dma.hbm_to_vmem [thread:$0]  %s163, 256, %s165, %s154, 64, 64, 4
        $region28: #{tpu_custom_call.1} parent=23 // pred_fallthru
          _
      $region24: #{tpu_custom_call.1} parent=5 // pred_fallthru
        _
      %p171 = scmp.le.s32.totalorder 1, %s13
      %p172 = scmp.lt.s32.totalorder %s13, 5
      %p173 = pnand %p171, %p172
      %p174 = pneg %p173
      // Predicated region
      $region29: #{tpu_custom_call.1} parent=5 // pred_check
        _
      $region30: #{tpu_custom_call.1} parent=5 // pred_check_branch
        %176 = sbr.rel (%p173) target = $region32
      $region31: #{tpu_custom_call.1} parent=5 // pred_region
        %s177 = ssub.s32 %s13, 1
        %s178 = sand.u32 %s26, 1
        %s179 = scalar_lea.sflag [#allocation3], %s178
        %s180 = sand.u32 %s26, 1
        %s181 = smul.addr %s180, 16
        %s182 = scalar_lea.vmem [#allocation2], %s181
        // Predicated region
        $region33: #{tpu_custom_call.1} parent=31 // pred_check
          %p183 = pneg %p39
        $region34: #{tpu_custom_call.1} parent=31 // pred_check_branch
          %185 = sbr.rel (%p183) target = $region36
        $region35: #{tpu_custom_call.1} parent=31 // pred_region
          %186 = dma.done %s179, 256
        $region36: #{tpu_custom_call.1} parent=31 // pred_fallthru
          _
        // Predicated region
        $region37: #{tpu_custom_call.1} parent=31 // pred_check
          %p187 = pneg %p60
        $region38: #{tpu_custom_call.1} parent=31 // pred_check_branch
          %189 = sbr.rel (%p187) target = $region40
        $region39: #{tpu_custom_call.1} parent=31 // pred_region
          %190 = dma.done [#allocation5], 4096
        $region40: #{tpu_custom_call.1} parent=31 // pred_fallthru
          _
        // Predicated region
        $region41: #{tpu_custom_call.1} parent=31 // pred_check
          %p191 = pneg %p81
        $region42: #{tpu_custom_call.1} parent=31 // pred_check_branch
          %193 = sbr.rel (%p191) target = $region44
        $region43: #{tpu_custom_call.1} parent=31 // pred_region
          %194 = dma.done [#allocation5], 128
        $region44: #{tpu_custom_call.1} parent=31 // pred_fallthru
          _
        %s195 = sand.u32 %s26, 1
        %s196 = scalar_lea.sflag [#allocation3], %s195
        %s197 = sand.u32 %s26, 1
        %s198 = smul.addr %s197, 16
        %s199 = scalar_lea.vmem [#allocation2], %s198
        %p200 = pneg %p39
        %p201 = pneg %p36
        %p202 = pneg %p60
        %p203 = pneg %p57
        %p204 = pneg %p81
        %p205 = pneg %p78
        %p206 = pneg %p107
        %p207 = pneg %p104
        %s208 = smul.u32 4, %s18
        %p209 = scmp.lt.s32.totalorder %s208, 15
        %s210 = scalar_select %p209, %s208, 15
        %s211 = smul.addr %s210, 8
        %s212 = scalar_lea.vmem %s3, %s211
        %s213 = smul.u32 4, %s18
        %s214 = smul.u32 4, %s18
        %p215 = scmp.lt.s32.totalorder %s214, 15
        %s216 = scalar_select %p215, %s214, 15
        %s217 = smul.addr %s216, 8
        %s218 = scalar_lea.vmem %s3, %s217
        %s219 = smul.u32 4, %s18
        %v221 = vld [vmem:[%s182] sm:$0xf]
        %v222 = vld [vmem:[%s182 + $0x4] sm:$0xf]
        %v223 = vld [vmem:[%s182 + $0x8] sm:$0xf]
        %v224 = vld [vmem:[%s182 + $0xc] sm:$0xf]
        %v225 = vld [vmem:[#allocation4] sm:$0xf]
        %v226 = vld [vmem:[#allocation4 + $0x4] sm:$0xf]
        %v227 = vld [vmem:[#allocation4 + $0x8] sm:$0xf]
        %v228 = vld [vmem:[#allocation4 + $0xc] sm:$0xf]
        %v229 = vld [vmem:[#allocation4 + $0x10] sm:$0xf]
        %v230 = vld [vmem:[#allocation4 + $0x14] sm:$0xf]
        %v231 = vld [vmem:[#allocation4 + $0x18] sm:$0xf]
        %v232 = vld [vmem:[#allocation4 + $0x1c] sm:$0xf]
        %v233 = vld [vmem:[#allocation4 + $0x20] sm:$0xf]
        %v234 = vld [vmem:[#allocation4 + $0x24] sm:$0xf]
        %v235 = vld [vmem:[#allocation4 + $0x28] sm:$0xf]
        %v236 = vld [vmem:[#allocation4 + $0x2c] sm:$0xf]
        %v237 = vld [vmem:[#allocation4 + $0x30] sm:$0xf]
        %v238 = vld [vmem:[#allocation4 + $0x34] sm:$0xf]
        %v239 = vld [vmem:[#allocation4 + $0x38] sm:$0xf]
        %v240 = vld [vmem:[#allocation4 + $0x3c] sm:$0xf]
        %v241 = vld [vmem:[#allocation6] sm:$0x1]
        %v242 = vlaneseq
        %v243 = vshrl.u32 %v242, 7
        %v244 = vsub.s32 0, %v243
        %v245 = vrot.slane %v241, %v244
        %v250 = vunpack.c.l.b16 %v221
        %v251 = vunpack.c.l.b16 %v222
        %v252 = vunpack.c.l.b16 %v223
        %v253 = vunpack.c.l.b16 %v224
        %v254 = vpack.c.b16 %v251, %v250
        %v255 = vpack.c.b16 %v253, %v252
        %v274 = vunpack.c.l.b16 %v225
        %v275 = vunpack.c.l.b16 %v226
        %v276 = vunpack.c.l.b16 %v227
        %v277 = vunpack.c.l.b16 %v228
        %v278 = vunpack.c.l.b16 %v229
        %v279 = vunpack.c.l.b16 %v230
        %v280 = vunpack.c.l.b16 %v231
        %v281 = vunpack.c.l.b16 %v232
        %v282 = vunpack.c.l.b16 %v233
        %v283 = vunpack.c.l.b16 %v234
        %v284 = vunpack.c.l.b16 %v235
        %v285 = vunpack.c.l.b16 %v236
        %v286 = vunpack.c.l.b16 %v237
        %v287 = vunpack.c.l.b16 %v238
        %v288 = vunpack.c.l.b16 %v239
        %v289 = vunpack.c.l.b16 %v240
        %v290 = vpack.c.b16 %v275, %v274
        %v291 = vpack.c.b16 %v277, %v276
        %v292 = vpack.c.b16 %v279, %v278
        %v293 = vpack.c.b16 %v281, %v280
        %v294 = vpack.c.b16 %v283, %v282
        %v295 = vpack.c.b16 %v285, %v284
        %v296 = vpack.c.b16 %v287, %v286
        %v297 = vpack.c.b16 %v289, %v288
        %306 = vmatprep.subr.bf16.mxu0 0
        %307 = vmatpush1.bf16.msra.mxu0 %v290
        %308 = vmatprep.subr.bf16.mxu0 0
        %309 = vmatpush1.bf16.msra.mxu0 %v291
        %310 = vmatprep.subr.bf16.mxu0 0
        %311 = vmatpush1.bf16.msra.mxu0 %v292
        %312 = vmatprep.subr.bf16.mxu0 0
        %313 = vmatpush1.bf16.msra.mxu0 %v293
        %314 = vmatprep.subr.bf16.mxu0 0
        %315 = vmatpush1.bf16.msra.mxu0 %v294
        %316 = vmatprep.subr.bf16.mxu0 0
        %317 = vmatpush1.bf16.msra.mxu0 %v295
        %318 = vmatprep.subr.bf16.mxu0 0
        %319 = vmatpush1.bf16.msra.mxu0 %v296
        %320 = vmatprep.subr.bf16.mxu0 0
        %321 = vmatpush1.bf16.msra.mxu0 %v297
        %322 = vmatprep.subr.bf16.mxu0 0
        %323 = vmatpush1.bf16.msra.mxu0 0
        %324 = vmatprep.subr.bf16.mxu0 0
        %325 = vmatpush1.bf16.msra.mxu0 0
        %326 = vmatprep.subr.bf16.mxu0 0
        %327 = vmatpush1.bf16.msra.mxu0 0
        %328 = vmatprep.subr.bf16.mxu0 0
        %329 = vmatpush1.bf16.msra.mxu0 0
        %330 = vmatprep.subr.bf16.mxu0 0
        %331 = vmatpush1.bf16.msra.mxu0 0
        %332 = vmatprep.subr.bf16.mxu0 0
        %333 = vmatpush1.bf16.msra.mxu0 0
        %334 = vmatprep.subr.bf16.mxu0 0
        %335 = vmatpush1.bf16.msra.mxu0 0
        %336 = vmatprep.subr.bf16.mxu0 0
        %337 = vmatpush1.bf16.msra.mxu0 0
        %338 = vmatprep.mubr.bf16.mxu0 0
        %339 = vmatmul.mubr.bf16.gmra.mrb[0].mxu0 %v254
        %v340 = vpop.f32.mrb[0].mxu0
        %v341 = vadd.f32 %v245, %v340
        %v342 = vpop.f32.mrb[0].mxu0
        %v343 = vpop.f32.mrb[0].mxu0
        %v344 = vadd.f32 %v245, %v343
        %v345 = vpop.f32.mrb[0].mxu0
        %346 = vmatprep.mubr.bf16.mxu0 0
        %347 = vmatmul.mubr.bf16.gmra.mrb[0].mxu0 %v255
        %v348 = vpop.f32.mrb[0].mxu0
        %v349 = vadd.f32 %v245, %v348
        %v350 = vpop.f32.mrb[0].mxu0
        %v351 = vpop.f32.mrb[0].mxu0
        %v352 = vadd.f32 %v245, %v351
        %v353 = vpop.f32.mrb[0].mxu0
        %354 = vdwg.mxu0
        %v355 = vpack.c.bf16 %v344, %v341
        %v356 = vpack.c.bf16 %v352, %v349
        %v357 = vtanh.bf16.pop %v355
        %v358 = vtanh.bf16.pop %v356
        %s359 = scalar_lea.vmem [#allocation4], 64
        %v360 = vld [vmem:[%s359] sm:$0xf]
        %v361 = vld [vmem:[%s359 + $0x4] sm:$0xf]
        %v362 = vld [vmem:[%s359 + $0x8] sm:$0xf]
        %v363 = vld [vmem:[%s359 + $0xc] sm:$0xf]
        %v364 = vld [vmem:[%s359 + $0x10] sm:$0xf]
        %v365 = vld [vmem:[%s359 + $0x14] sm:$0xf]
        %v366 = vld [vmem:[%s359 + $0x18] sm:$0xf]
        %v367 = vld [vmem:[%s359 + $0x1c] sm:$0xf]
        %v368 = vld [vmem:[%s359 + $0x20] sm:$0xf]
        %v369 = vld [vmem:[%s359 + $0x24] sm:$0xf]
        %v370 = vld [vmem:[%s359 + $0x28] sm:$0xf]
        %v371 = vld [vmem:[%s359 + $0x2c] sm:$0xf]
        %v372 = vld [vmem:[%s359 + $0x30] sm:$0xf]
        %v373 = vld [vmem:[%s359 + $0x34] sm:$0xf]
        %v374 = vld [vmem:[%s359 + $0x38] sm:$0xf]
        %v375 = vld [vmem:[%s359 + $0x3c] sm:$0xf]
        %v376 = vld [vmem:[#allocation6 + $0x1] sm:$0x1]
        %v377 = vlaneseq
        %v378 = vshrl.u32 %v377, 7
        %v379 = vsub.s32 0, %v378
        %v380 = vrot.slane %v376, %v379
        %v397 = vunpack.c.l.b16 %v360
        %v398 = vunpack.c.l.b16 %v361
        %v399 = vunpack.c.l.b16 %v362
        %v400 = vunpack.c.l.b16 %v363
        %v401 = vunpack.c.l.b16 %v364
        %v402 = vunpack.c.l.b16 %v365
        %v403 = vunpack.c.l.b16 %v366
        %v404 = vunpack.c.l.b16 %v367
        %v405 = vunpack.c.l.b16 %v368
        %v406 = vunpack.c.l.b16 %v369
        %v407 = vunpack.c.l.b16 %v370
        %v408 = vunpack.c.l.b16 %v371
        %v409 = vunpack.c.l.b16 %v372
        %v410 = vunpack.c.l.b16 %v373
        %v411 = vunpack.c.l.b16 %v374
        %v412 = vunpack.c.l.b16 %v375
        %v413 = vpack.c.b16 %v398, %v397
        %v414 = vpack.c.b16 %v400, %v399
        %v415 = vpack.c.b16 %v402, %v401
        %v416 = vpack.c.b16 %v404, %v403
        %v417 = vpack.c.b16 %v406, %v405
        %v418 = vpack.c.b16 %v408, %v407
        %v419 = vpack.c.b16 %v410, %v409
        %v420 = vpack.c.b16 %v412, %v411
        %429 = vmatprep.subr.bf16.mxu0 0
        %430 = vmatpush1.bf16.msra.mxu0 %v413
        %431 = vmatprep.subr.bf16.mxu0 0
        %432 = vmatpush1.bf16.msra.mxu0 %v414
        %433 = vmatprep.subr.bf16.mxu0 0
        %434 = vmatpush1.bf16.msra.mxu0 %v415
        %435 = vmatprep.subr.bf16.mxu0 0
        %436 = vmatpush1.bf16.msra.mxu0 %v416
        %437 = vmatprep.subr.bf16.mxu0 0
        %438 = vmatpush1.bf16.msra.mxu0 %v417
        %439 = vmatprep.subr.bf16.mxu0 0
        %440 = vmatpush1.bf16.msra.mxu0 %v418
        %441 = vmatprep.subr.bf16.mxu0 0
        %442 = vmatpush1.bf16.msra.mxu0 %v419
        %443 = vmatprep.subr.bf16.mxu0 0
        %444 = vmatpush1.bf16.msra.mxu0 %v420
        %445 = vmatprep.subr.bf16.mxu0 0
        %446 = vmatpush1.bf16.msra.mxu0 0
        %447 = vmatprep.subr.bf16.mxu0 0
        %448 = vmatpush1.bf16.msra.mxu0 0
        %449 = vmatprep.subr.bf16.mxu0 0
        %450 = vmatpush1.bf16.msra.mxu0 0
        %451 = vmatprep.subr.bf16.mxu0 0
        %452 = vmatpush1.bf16.msra.mxu0 0
        %453 = vmatprep.subr.bf16.mxu0 0
        %454 = vmatpush1.bf16.msra.mxu0 0
        %455 = vmatprep.subr.bf16.mxu0 0
        %456 = vmatpush1.bf16.msra.mxu0 0
        %457 = vmatprep.subr.bf16.mxu0 0
        %458 = vmatpush1.bf16.msra.mxu0 0
        %459 = vmatprep.subr.bf16.mxu0 0
        %460 = vmatpush1.bf16.msra.mxu0 0
        %461 = vmatprep.mubr.bf16.mxu0 0
        %462 = vmatmul.mubr.bf16.gmra.mrb[0].mxu0 %v357
        %v463 = vpop.f32.mrb[0].mxu0
        %v464 = vadd.f32 %v380, %v463
        %v465 = vpop.f32.mrb[0].mxu0
        %v466 = vpop.f32.mrb[0].mxu0
        %v467 = vadd.f32 %v380, %v466
        %v468 = vpop.f32.mrb[0].mxu0
        %469 = vmatprep.mubr.bf16.mxu0 0
        %470 = vmatmul.mubr.bf16.gmra.mrb[0].mxu0 %v358
        %v471 = vpop.f32.mrb[0].mxu0
        %v472 = vadd.f32 %v380, %v471
        %v473 = vpop.f32.mrb[0].mxu0
        %v474 = vpop.f32.mrb[0].mxu0
        %v475 = vadd.f32 %v380, %v474
        %v476 = vpop.f32.mrb[0].mxu0
        %477 = vdwg.mxu0
        %v478 = vpack.c.bf16 %v467, %v464
        %v479 = vpack.c.bf16 %v475, %v472
        %v480 = vtanh.bf16.pop %v478
        %v481 = vtanh.bf16.pop %v479
        %s482 = scalar_lea.vmem [#allocation4], 128
        %v483 = vld [vmem:[%s482] sm:$0xf]
        %v484 = vld [vmem:[%s482 + $0x4] sm:$0xf]
        %v485 = vld [vmem:[%s482 + $0x8] sm:$0xf]
        %v486 = vld [vmem:[%s482 + $0xc] sm:$0xf]
        %v487 = vld [vmem:[%s482 + $0x10] sm:$0xf]
        %v488 = vld [vmem:[%s482 + $0x14] sm:$0xf]
        %v489 = vld [vmem:[%s482 + $0x18] sm:$0xf]
        %v490 = vld [vmem:[%s482 + $0x1c] sm:$0xf]
        %v491 = vld [vmem:[%s482 + $0x20] sm:$0xf]
        %v492 = vld [vmem:[%s482 + $0x24] sm:$0xf]
        %v493 = vld [vmem:[%s482 + $0x28] sm:$0xf]
        %v494 = vld [vmem:[%s482 + $0x2c] sm:$0xf]
        %v495 = vld [vmem:[%s482 + $0x30] sm:$0xf]
        %v496 = vld [vmem:[%s482 + $0x34] sm:$0xf]
        %v497 = vld [vmem:[%s482 + $0x38] sm:$0xf]
        %v498 = vld [vmem:[%s482 + $0x3c] sm:$0xf]
        %v499 = vld [vmem:[#allocation6 + $0x2] sm:$0x1]
        %v500 = vlaneseq
        %v501 = vshrl.u32 %v500, 7
        %v502 = vsub.s32 0, %v501
        %v503 = vrot.slane %v499, %v502
        %v520 = vunpack.c.l.b16 %v483
        %v521 = vunpack.c.l.b16 %v484
        %v522 = vunpack.c.l.b16 %v485
        %v523 = vunpack.c.l.b16 %v486
        %v524 = vunpack.c.l.b16 %v487
        %v525 = vunpack.c.l.b16 %v488
        %v526 = vunpack.c.l.b16 %v489
        %v527 = vunpack.c.l.b16 %v490
        %v528 = vunpack.c.l.b16 %v491
        %v529 = vunpack.c.l.b16 %v492
        %v530 = vunpack.c.l.b16 %v493
        %v531 = vunpack.c.l.b16 %v494
        %v532 = vunpack.c.l.b16 %v495
        %v533 = vunpack.c.l.b16 %v496
        %v534 = vunpack.c.l.b16 %v497
        %v535 = vunpack.c.l.b16 %v498
        %v536 = vpack.c.b16 %v521, %v520
        %v537 = vpack.c.b16 %v523, %v522
        %v538 = vpack.c.b16 %v525, %v524
        %v539 = vpack.c.b16 %v527, %v526
        %v540 = vpack.c.b16 %v529, %v528
        %v541 = vpack.c.b16 %v531, %v530
        %v542 = vpack.c.b16 %v533, %v532
        %v543 = vpack.c.b16 %v535, %v534
        %552 = vmatprep.subr.bf16.mxu0 0
        %553 = vmatpush1.bf16.msra.mxu0 %v536
        %554 = vmatprep.subr.bf16.mxu0 0
        %555 = vmatpush1.bf16.msra.mxu0 %v537
        %556 = vmatprep.subr.bf16.mxu0 0
        %557 = vmatpush1.bf16.msra.mxu0 %v538
        %558 = vmatprep.subr.bf16.mxu0 0
        %559 = vmatpush1.bf16.msra.mxu0 %v539
        %560 = vmatprep.subr.bf16.mxu0 0
        %561 = vmatpush1.bf16.msra.mxu0 %v540
        %562 = vmatprep.subr.bf16.mxu0 0
        %563 = vmatpush1.bf16.msra.mxu0 %v541
        %564 = vmatprep.subr.bf16.mxu0 0
        %565 = vmatpush1.bf16.msra.mxu0 %v542
        %566 = vmatprep.subr.bf16.mxu0 0
        %567 = vmatpush1.bf16.msra.mxu0 %v543
        %568 = vmatprep.subr.bf16.mxu0 0
        %569 = vmatpush1.bf16.msra.mxu0 0
        %570 = vmatprep.subr.bf16.mxu0 0
        %571 = vmatpush1.bf16.msra.mxu0 0
        %572 = vmatprep.subr.bf16.mxu0 0
        %573 = vmatpush1.bf16.msra.mxu0 0
        %574 = vmatprep.subr.bf16.mxu0 0
        %575 = vmatpush1.bf16.msra.mxu0 0
        %576 = vmatprep.subr.bf16.mxu0 0
        %577 = vmatpush1.bf16.msra.mxu0 0
        %578 = vmatprep.subr.bf16.mxu0 0
        %579 = vmatpush1.bf16.msra.mxu0 0
        %580 = vmatprep.subr.bf16.mxu0 0
        %581 = vmatpush1.bf16.msra.mxu0 0
        %582 = vmatprep.subr.bf16.mxu0 0
        %583 = vmatpush1.bf16.msra.mxu0 0
        %584 = vmatprep.mubr.bf16.mxu0 0
        %585 = vmatmul.mubr.bf16.gmra.mrb[0].mxu0 %v480
        %v586 = vpop.f32.mrb[0].mxu0
        %v587 = vadd.f32 %v503, %v586
        %v588 = vpop.f32.mrb[0].mxu0
        %v589 = vpop.f32.mrb[0].mxu0
        %v590 = vadd.f32 %v503, %v589
        %v591 = vpop.f32.mrb[0].mxu0
        %592 = vmatprep.mubr.bf16.mxu0 0
        %593 = vmatmul.mubr.bf16.gmra.mrb[0].mxu0 %v481
        %v594 = vpop.f32.mrb[0].mxu0
        %v595 = vadd.f32 %v503, %v594
        %v596 = vpop.f32.mrb[0].mxu0
        %v597 = vpop.f32.mrb[0].mxu0
        %v598 = vadd.f32 %v503, %v597
        %v599 = vpop.f32.mrb[0].mxu0
        %600 = vdwg.mxu0
        %v601 = vpack.c.bf16 %v590, %v587
        %v602 = vpack.c.bf16 %v598, %v595
        %v603 = vtanh.bf16.pop %v601
        %v604 = vtanh.bf16.pop %v602
        %s605 = scalar_lea.vmem [#allocation4], 192
        %v606 = vld [vmem:[%s605] sm:$0xf]
        %v607 = vld [vmem:[%s605 + $0x4] sm:$0xf]
        %v608 = vld [vmem:[%s605 + $0x8] sm:$0xf]
        %v609 = vld [vmem:[%s605 + $0xc] sm:$0xf]
        %v610 = vld [vmem:[%s605 + $0x10] sm:$0xf]
        %v611 = vld [vmem:[%s605 + $0x14] sm:$0xf]
        %v612 = vld [vmem:[%s605 + $0x18] sm:$0xf]
        %v613 = vld [vmem:[%s605 + $0x1c] sm:$0xf]
        %v614 = vld [vmem:[%s605 + $0x20] sm:$0xf]
        %v615 = vld [vmem:[%s605 + $0x24] sm:$0xf]
        %v616 = vld [vmem:[%s605 + $0x28] sm:$0xf]
        %v617 = vld [vmem:[%s605 + $0x2c] sm:$0xf]
        %v618 = vld [vmem:[%s605 + $0x30] sm:$0xf]
        %v619 = vld [vmem:[%s605 + $0x34] sm:$0xf]
        %v620 = vld [vmem:[%s605 + $0x38] sm:$0xf]
        %v621 = vld [vmem:[%s605 + $0x3c] sm:$0xf]
        %v622 = vld [vmem:[#allocation6 + $0x3] sm:$0x1]
        %v623 = vlaneseq
        %v624 = vshrl.u32 %v623, 7
        %v625 = vsub.s32 0, %v624
        %v626 = vrot.slane %v622, %v625
        %v643 = vunpack.c.l.b16 %v606
        %v644 = vunpack.c.l.b16 %v607
        %v645 = vunpack.c.l.b16 %v608
        %v646 = vunpack.c.l.b16 %v609
        %v647 = vunpack.c.l.b16 %v610
        %v648 = vunpack.c.l.b16 %v611
        %v649 = vunpack.c.l.b16 %v612
        %v650 = vunpack.c.l.b16 %v613
        %v651 = vunpack.c.l.b16 %v614
        %v652 = vunpack.c.l.b16 %v615
        %v653 = vunpack.c.l.b16 %v616
        %v654 = vunpack.c.l.b16 %v617
        %v655 = vunpack.c.l.b16 %v618
        %v656 = vunpack.c.l.b16 %v619
        %v657 = vunpack.c.l.b16 %v620
        %v658 = vunpack.c.l.b16 %v621
        %v659 = vpack.c.b16 %v644, %v643
        %v660 = vpack.c.b16 %v646, %v645
        %v661 = vpack.c.b16 %v648, %v647
        %v662 = vpack.c.b16 %v650, %v649
        %v663 = vpack.c.b16 %v652, %v651
        %v664 = vpack.c.b16 %v654, %v653
        %v665 = vpack.c.b16 %v656, %v655
        %v666 = vpack.c.b16 %v658, %v657
        %675 = vmatprep.subr.bf16.mxu0 0
        %676 = vmatpush1.bf16.msra.mxu0 %v659
        %677 = vmatprep.subr.bf16.mxu0 0
        %678 = vmatpush1.bf16.msra.mxu0 %v660
        %679 = vmatprep.subr.bf16.mxu0 0
        %680 = vmatpush1.bf16.msra.mxu0 %v661
        %681 = vmatprep.subr.bf16.mxu0 0
        %682 = vmatpush1.bf16.msra.mxu0 %v662
        %683 = vmatprep.subr.bf16.mxu0 0
        %684 = vmatpush1.bf16.msra.mxu0 %v663
        %685 = vmatprep.subr.bf16.mxu0 0
        %686 = vmatpush1.bf16.msra.mxu0 %v664
        %687 = vmatprep.subr.bf16.mxu0 0
        %688 = vmatpush1.bf16.msra.mxu0 %v665
        %689 = vmatprep.subr.bf16.mxu0 0
        %690 = vmatpush1.bf16.msra.mxu0 %v666
        %691 = vmatprep.subr.bf16.mxu0 0
        %692 = vmatpush1.bf16.msra.mxu0 0
        %693 = vmatprep.subr.bf16.mxu0 0
        %694 = vmatpush1.bf16.msra.mxu0 0
        %695 = vmatprep.subr.bf16.mxu0 0
        %696 = vmatpush1.bf16.msra.mxu0 0
        %697 = vmatprep.subr.bf16.mxu0 0
        %698 = vmatpush1.bf16.msra.mxu0 0
        %699 = vmatprep.subr.bf16.mxu0 0
        %700 = vmatpush1.bf16.msra.mxu0 0
        %701 = vmatprep.subr.bf16.mxu0 0
        %702 = vmatpush1.bf16.msra.mxu0 0
        %703 = vmatprep.subr.bf16.mxu0 0
        %704 = vmatpush1.bf16.msra.mxu0 0
        %705 = vmatprep.subr.bf16.mxu0 0
        %706 = vmatpush1.bf16.msra.mxu0 0
        %707 = vmatprep.mubr.bf16.mxu0 0
        %708 = vmatmul.mubr.bf16.gmra.mrb[0].mxu0 %v603
        %v709 = vpop.f32.mrb[0].mxu0
        %v710 = vadd.f32 %v626, %v709
        %v711 = vpop.f32.mrb[0].mxu0
        %v712 = vpop.f32.mrb[0].mxu0
        %v713 = vadd.f32 %v626, %v712
        %v714 = vpop.f32.mrb[0].mxu0
        %715 = vmatprep.mubr.bf16.mxu0 0
        %716 = vmatmul.mubr.bf16.gmra.mrb[0].mxu0 %v604
        %v717 = vpop.f32.mrb[0].mxu0
        %v718 = vadd.f32 %v626, %v717
        %v719 = vpop.f32.mrb[0].mxu0
        %v720 = vpop.f32.mrb[0].mxu0
        %v721 = vadd.f32 %v626, %v720
        %v722 = vpop.f32.mrb[0].mxu0
        %723 = vdwg.mxu0
        %v724 = vpack.c.bf16 %v713, %v710
        %v725 = vpack.c.bf16 %v721, %v718
        %v726 = vtanh.bf16.pop %v724
        %v727 = vtanh.bf16.pop %v725
        %v728 = vld [vmem:[#allocation6 + $0x5] sm:$0x1]
        %v729 = vunpack.c.l.bf16 %v726
        %v730 = vunpack.c.h.bf16 %v726
        %v731 = vunpack.c.l.bf16 %v727
        %v732 = vunpack.c.h.bf16 %v727
        %v733 = vlaneseq
        %v734 = vshrl.u32 %v733, 7
        %v735 = vsub.s32 0, %v734
        %v736 = vrot.slane %v728, %v735
        %v737 = vmul.f32 %v729, %v736
        %v738 = vmul.f32 %v730, %v736
        %v739 = vmul.f32 %v731, %v736
        %v740 = vmul.f32 %v732, %v736
        %741 = vadd.xlane.f32.xlu0 %v737
        %v742 = vpop.xlane.xlu0 %741
        %743 = vadd.xlane.f32.xlu0 %v738
        %v744 = vpop.xlane.xlu0 %743
        %745 = vadd.xlane.f32.xlu0 %v739
        %v746 = vpop.xlane.xlu0 %745
        %747 = vadd.xlane.f32.xlu0 %v740
        %v748 = vpop.xlane.xlu0 %747
        %v749 = vld [vmem:[#allocation6 + $0x4] sm:$0x1]
        %v750 = vlaneseq
        %v751 = vshrl.u32 %v750, 7
        %v752 = vsub.s32 0, %v751
        %v753 = vrot.slane %v749, %v752
        %v754 = vadd.f32 %v742, %v753
        %v755 = vadd.f32 %v744, %v753
        %v756 = vadd.f32 %v746, %v753
        %v757 = vadd.f32 %v748, %v753
        %v758 = vxor.u32 %v754, 2147483648
        %v759 = vxor.u32 %v755, 2147483648
        %v760 = vxor.u32 %v756, 2147483648
        %v761 = vxor.u32 %v757, 2147483648
        %v762 = vmul.f32 %v758, 1.442695
        %v763 = vpow.pop %v762
        %v764 = vmul.f32 %v759, 1.442695
        %v765 = vpow.pop %v764
        %v766 = vmul.f32 %v760, 1.442695
        %v767 = vpow.pop %v766
        %v768 = vmul.f32 %v761, 1.442695
        %v769 = vpow.pop %v768
        %v770 = vadd.f32 %v763, 1.0
        %v771 = vadd.f32 %v765, 1.0
        %v772 = vadd.f32 %v767, 1.0
        %v773 = vadd.f32 %v769, 1.0
        %v774 = vrcp.pop %v770
        %v775 = vmul.f32 1.0, %v774
        %v776 = vrcp.pop %v771
        %v777 = vmul.f32 1.0, %v776
        %v778 = vrcp.pop %v772
        %v779 = vmul.f32 1.0, %v778
        %v780 = vrcp.pop %v773
        %v781 = vmul.f32 1.0, %v780
        %vm782 = vcmask 7168
        %783 = vst.msk [vmem:[%s218] sm:$0xff] %vm782, %v775
        %784 = vst.msk [vmem:[%s218 + $0x8] sm:$0xff] %vm782, %v777
        %785 = vst.msk [vmem:[%s218 + $0x10] sm:$0xff] %vm782, %v779
        %786 = vst.msk [vmem:[%s218 + $0x18] sm:$0xff] %vm782, %v781
        %s787 = smul.u32 4, %s18
        %p788 = scmp.lt.s32.totalorder %s787, 15
        %s789 = scalar_select %p788, %s787, 15
        %s790 = smul.addr %s789, 8
        %s791 = scalar_lea.vmem %s3, %s790
        // Predicated region
        $region45: #{tpu_custom_call.1} parent=31 // pred_check
          %p792 = pneg %p104
        $region46: #{tpu_custom_call.1} parent=31 // pred_check_branch
          %794 = sbr.rel (%p792) target = $region48
        $region47: #{tpu_custom_call.1} parent=31 // pred_region
          %s795 = smul.u32 4, %s18
        $region48: #{tpu_custom_call.1} parent=31 // pred_fallthru
          _
      $region32: #{tpu_custom_call.1} parent=5 // pred_fallthru
        _
      %p796 = scmp.le.s32.totalorder 2, %s13
      // Predicated region
      $region49: #{tpu_custom_call.1} parent=5 // pred_check
        %p797 = pneg %p796
      $region50: #{tpu_custom_call.1} parent=5 // pred_check_branch
        %799 = sbr.rel (%p797) target = $region52
      $region51: #{tpu_custom_call.1} parent=5 // pred_region
        %s800 = ssub.s32 %s13, 2
        // Predicated region
        $region53: #{tpu_custom_call.1} parent=51 // pred_check
          %p801 = pneg %p110
        $region54: #{tpu_custom_call.1} parent=51 // pred_check_branch
          %803 = sbr.rel (%p801) target = $region56
        $region55: #{tpu_custom_call.1} parent=51 // pred_region
          %s804 = smul.u32 4, %s19
          %p805 = scmp.lt.s32.totalorder %s804, 15
          %s806 = scalar_select %p805, %s804, 15
          %s807 = smul.addr %s806, 8
          %s808 = scalar_lea.vmem %s3, %s807
        $region56: #{tpu_custom_call.1} parent=51 // pred_fallthru
          _
      $region52: #{tpu_custom_call.1} parent=5 // pred_fallthru
        _
    $region6: #{tpu_custom_call.1} parent=1 // loop_footer
      %s17 = sadd.s32 1, %s13
    $region7: #{tpu_custom_call.1} parent=1 // loop_footer_branch
      %12 = sbr.rel target = $region3
    $region8: #{tpu_custom_call.1} parent=1 // loop_exit
      _
    %809 = vsyncpa [#allocation3], 1
    %s810 = scalar_lea.sflag [#allocation3], 1
    %811 = vsyncpa %s810, 1
    %812 = vsyncpa [#allocation5], 1

</llo_original>
